<compile_context>
chip_gen: v6e
topology: v6e:2x2x1
jax: 0.10.0
libtpu: 0.0.40
codegen_flags: <defaults>
</compile_context>

<pallas_src>
import math

import jax
import jax.numpy as jnp
from jax.experimental import pallas as pl
from jax.experimental.pallas import tpu as pltpu


def _round_up(x, m):
    return ((x + m - 1) // m) * m


def _vmem_capacity_bytes():
    """Physical VMEM capacity, with a conservative (v7x-sized) fallback."""
    try:
        info = pltpu.get_tpu_info()
        cap = getattr(info, "vmem_capacity_bytes", None)
        if cap:
            return int(cap)
    except Exception:
        pass
    return 64 * 1024 * 1024


def _tpe_kernel(t_ref, c_ref, out_ref):
    """out[r, l] = sin( sum_g t[r, g] * c[g, l] + c[G, l] ).

    t_ref:  (tr, G)  f32   -- G consecutive timepoints per slab row
    c_ref:  (G+1, L) f32   -- rows 0..G-1: frequency masked to the lane range owned by
                              slot g (zero elsewhere); row G: phase (0 on sin lanes,
                              pi/2 on cos lanes, since cos(x) == sin(x + pi/2)).
    out_ref:(tr, L)  f32   -- lane-dense output slab (L multiple of 128 when 128 % D == 0)
    """
    G = t_ref.shape[1]
    tv = t_ref[...]                                   # (tr, G)
    acc = tv[:, 0:1] * c_ref[0:1, :] + c_ref[G:G + 1, :]
    for g in range(1, G):                             # G is small & static -> unrolled
        acc = acc + tv[:, g:g + 1] * c_ref[g:g + 1, :]
    out_ref[...] = jnp.sin(acc)


def temporal_position_encoding(time_delta, event_mask, embedding_dim,
                               max_timepoint=10000.0, row_tile=None):
    """time_delta: (B, S) float, event_mask: (B, S) bool -> (B, S, D) float32."""
    B, S = time_delta.shape
    D = int(embedding_dim)
    N = B * S

    # --- time_from_deltas: masked deltas, exclusive cumsum (tiny (B,S) op, plain JAX) ---
    td = jnp.where(event_mask, time_delta.astype(jnp.float32), 0.0)
    t = jnp.concatenate(
        [jnp.zeros((B, 1), jnp.float32), jnp.cumsum(td, axis=-1)[:, :-1]], axis=-1)
    t_flat = t.reshape(-1)                             # (N,)

    # --- per-dim frequency / phase (PyTorch 0::2 sin, 1::2 cos; odd-D safe) ---
    half = jnp.arange(0, D, 2, dtype=jnp.float32)
    div_term = jnp.exp(half * (-math.log(max_timepoint) / D))          # ceil(D/2)
    freq_d = jnp.repeat(div_term, 2)[:D].astype(jnp.float32)           # (D,)
    phase_d = jnp.where(jnp.arange(D) % 2 == 1,
                        jnp.float32(math.pi / 2.0), jnp.float32(0.0))  # (D,)

    # --- slab layout: G timepoints per row, L = G*D lanes (128-multiple when possible) ---
    if D < 128 and 128 % D == 0 and (128 // D) <= 16:
        G = 128 // D          # e.g. D=32 -> G=4, L=128 (lane-dense path)
    else:
        G = 1                 # D % 128 == 0 is already lane-dense; odd / awkward D falls back
    L = G * D

    lane = jnp.arange(L)
    freq_row = jnp.tile(freq_d, G)                                     # (L,)
    phase_row = jnp.tile(phase_d, G)                                   # (L,)
    const_rows = [jnp.where(lane // D == g, freq_row, 0.0) for g in range(G)]
    consts = jnp.stack(const_rows + [phase_row]).astype(jnp.float32)   # (G+1, L)

    # --- generation-aware tiling ---
    vmem_cap = _vmem_capacity_bytes()
    target_block_bytes = max(4 << 20, min(12 << 20, vmem_cap // 6))
    num_rows = pl.cdiv(N, G)
    if row_tile is None:
        tr = max(8, (target_block_bytes // (4 * L) // 8) * 8)
    else:
        tr = row_tile
    tr = min(tr, _round_up(num_rows, 8))
    tr = max(8, (tr // 8) * 8)
    num_rows_pad = _round_up(num_rows, tr)
    grid = (num_rows_pad // tr,)

    total = num_rows_pad * G
    if total > N:
        t_flat = jnp.concatenate(
            [t_flat, jnp.zeros((total - N,), jnp.float32)], axis=0)
    t_slab = t_flat.reshape(num_rows_pad, G)

    cost = pl.CostEstimate(
        flops=2 * G * num_rows_pad * L,            # G muls + G adds per output element
        transcendentals=num_rows_pad * L,          # one sin per element
        bytes_accessed=4 * (num_rows_pad * L + num_rows_pad * G + (G + 1) * L),
    )

    out_slab = pl.pallas_call(
        _tpe_kernel,
        out_shape=jax.ShapeDtypeStruct((num_rows_pad, L), jnp.float32),
        grid=grid,
        in_specs=[
            pl.BlockSpec((tr, G), lambda i: (i, 0)),         # timepoints
            pl.BlockSpec((G + 1, L), lambda i: (0, 0)),      # resident freq-masks + phase
        ],
        out_specs=pl.BlockSpec((tr, L), lambda i: (i, 0)),
        compiler_params=pltpu.CompilerParams(
            dimension_semantics=("parallel",),
            vmem_limit_bytes=min(vmem_cap * 3 // 4, 96 << 20),
        ),
        cost_estimate=cost,
    )(t_slab, consts)

    # Row-major flatten of the slab is exactly (timepoint-major, dim-minor) order.
    # When no padding was needed this is a pure metadata reshape.
    return out_slab.reshape(-1)[: N * D].reshape(B, S, D)


def _reference(time_delta, event_mask, embedding_dim, max_timepoint=10000.0):
    """Plain-JAX reference mirroring the PyTorch module."""
    t_deltas = jnp.where(event_mask, time_delta, 0.0)
    t = jnp.concatenate(
        [jnp.zeros_like(t_deltas[:, :1]), jnp.cumsum(t_deltas, -1)[:, :-1]], axis=-1)
    half = jnp.arange(0, embedding_dim, 2, dtype=jnp.float32)
    div_term = jnp.exp(half * (-math.log(max_timepoint) / embedding_dim))
    sin_div = div_term
    cos_div = div_term if embedding_dim % 2 == 0 else div_term[:-1]
    B, S = t.shape
    out = jnp.zeros((B, S, embedding_dim), jnp.float32)
    out = out.at[:, :, 0::2].set(jnp.sin(t[:, :, None] * sin_div[None, None, :]))
    out = out.at[:, :, 1::2].set(jnp.cos(t[:, :, None] * cos_div[None, None, :]))
    return out


if __name__ == "__main__":
    key = jax.random.PRNGKey(0)
    k1, k2 = jax.random.split(key)

    B, S, D = 2, 8, 32
    time_delta = jax.random.uniform(k1, (B, S), jnp.float32, minval=0.0, maxval=5.0)
    event_mask = jax.random.uniform(k2, (B, S)) > 0.2   # bool (B, S)

    out = jax.block_until_ready(temporal_position_encoding(time_delta, event_mask, D))
    ref = _reference(time_delta, event_mask, D)
    assert out.shape == (B, S, D)
    assert jnp.allclose(out, ref, atol=2e-5, rtol=2e-5), "mismatch vs reference"

    # Odd embedding dim exercises the non-lane-dense fallback path (G=1) and the
    # cos_div_term[:-1] behaviour of the PyTorch module.
    D_odd = 33
    out_odd = jax.block_until_ready(
        temporal_position_encoding(time_delta, event_mask, D_odd))
    ref_odd = _reference(time_delta, event_mask, D_odd)
    assert out_odd.shape == (B, S, D_odd)
    assert jnp.allclose(out_odd, ref_odd, atol=2e-5, rtol=2e-5), "odd-D mismatch"

    print("KERNEL_OK")
</pallas_src>

<mosaic_0001>
module attributes {stable_mosaic.version = 11 : i64} {
  func.func @_tpe_kernel(%arg0: i32, %arg1: memref<8x4xf32, #tpu.memory_space<vmem>>, %arg2: memref<5x128xf32, #tpu.memory_space<vmem>>, %arg3: memref<8x128xf32, #tpu.memory_space<vmem>>) attributes {dimension_semantics = [#tpu.dimension_semantics<parallel>], iteration_bounds = array<i64: 1>, scalar_prefetch = 0 : i64, scratch_operands = 0 : i64, tpu.core_type = #tpu.core_type<tc>, window_params = [{transform_indices = @transform_0, window_bounds = array<i64: 8, 4>}, {pipeline_mode = #tpu.pipeline_mode<synchronous>, transform_indices = @transform_1, window_bounds = array<i64: 5, 128>}, {transform_indices = @transform_2, window_bounds = array<i64: 8, 128>}]} {
    %c0 = arith.constant 0 : index
    %c0_0 = arith.constant 0 : index
    %0 = vector.load %arg1[%c0, %c0_0] : memref<8x4xf32, #tpu.memory_space<vmem>>, vector<8x4xf32>
    %1 = vector.extract_strided_slice %0 {offsets = [0, 0], sizes = [8, 1], strides = [1, 1]} : vector<8x4xf32> to vector<8x1xf32>
    %c0_1 = arith.constant 0 : index
    %c0_2 = arith.constant 0 : index
    %2 = vector.load %arg2[%c0_1, %c0_2] : memref<5x128xf32, #tpu.memory_space<vmem>>, vector<1x128xf32>
    %3 = vector.broadcast %1 : vector<8x1xf32> to vector<8x128xf32>
    %4 = vector.broadcast %2 : vector<1x128xf32> to vector<8x128xf32>
    %5 = arith.mulf %3, %4 : vector<8x128xf32>
    %c4 = arith.constant 4 : index
    %c0_3 = arith.constant 0 : index
    %6 = vector.load %arg2[%c4, %c0_3] : memref<5x128xf32, #tpu.memory_space<vmem>>, vector<1x128xf32>
    %7 = vector.broadcast %6 : vector<1x128xf32> to vector<8x128xf32>
    %8 = arith.addf %5, %7 : vector<8x128xf32>
    %9 = vector.extract_strided_slice %0 {offsets = [0, 1], sizes = [8, 1], strides = [1, 1]} : vector<8x4xf32> to vector<8x1xf32>
    %c1 = arith.constant 1 : index
    %c0_4 = arith.constant 0 : index
    %10 = vector.load %arg2[%c1, %c0_4] : memref<5x128xf32, #tpu.memory_space<vmem>>, vector<1x128xf32>
    %11 = vector.broadcast %9 : vector<8x1xf32> to vector<8x128xf32>
    %12 = vector.broadcast %10 : vector<1x128xf32> to vector<8x128xf32>
    %13 = arith.mulf %11, %12 : vector<8x128xf32>
    %14 = arith.addf %8, %13 : vector<8x128xf32>
    %15 = vector.extract_strided_slice %0 {offsets = [0, 2], sizes = [8, 1], strides = [1, 1]} : vector<8x4xf32> to vector<8x1xf32>
    %c2 = arith.constant 2 : index
    %c0_5 = arith.constant 0 : index
    %16 = vector.load %arg2[%c2, %c0_5] : memref<5x128xf32, #tpu.memory_space<vmem>>, vector<1x128xf32>
    %17 = vector.broadcast %15 : vector<8x1xf32> to vector<8x128xf32>
    %18 = vector.broadcast %16 : vector<1x128xf32> to vector<8x128xf32>
    %19 = arith.mulf %17, %18 : vector<8x128xf32>
    %20 = arith.addf %14, %19 : vector<8x128xf32>
    %21 = vector.extract_strided_slice %0 {offsets = [0, 3], sizes = [8, 1], strides = [1, 1]} : vector<8x4xf32> to vector<8x1xf32>
    %c3 = arith.constant 3 : index
    %c0_6 = arith.constant 0 : index
    %22 = vector.load %arg2[%c3, %c0_6] : memref<5x128xf32, #tpu.memory_space<vmem>>, vector<1x128xf32>
    %23 = vector.broadcast %21 : vector<8x1xf32> to vector<8x128xf32>
    %24 = vector.broadcast %22 : vector<1x128xf32> to vector<8x128xf32>
    %25 = arith.mulf %23, %24 : vector<8x128xf32>
    %26 = arith.addf %20, %25 : vector<8x128xf32>
    %27 = math.sin %26 : vector<8x128xf32>
    %c0_7 = arith.constant 0 : index
    %c0_8 = arith.constant 0 : index
    %28 = vector.load %arg3[%c0_7, %c0_8] : memref<8x128xf32, #tpu.memory_space<vmem>>, vector<8x128xf32>
    tpu.vector_store %arg3[%c0_7, %c0_8], %27 {strides = array<i32>} : memref<8x128xf32, #tpu.memory_space<vmem>>, vector<8x128xf32>,
    return
  }
  func.func @transform_0(%arg0: i32) -> (i32, i32) {
    %c0_i32 = arith.constant 0 : i32
    %c0_i32_0 = arith.constant 0 : i32
    return %arg0, %c0_i32 : i32, i32
  }
  func.func @transform_1(%arg0: i32) -> (i32, i32) {
    %c0_i32 = arith.constant 0 : i32
    %c0_i32_0 = arith.constant 0 : i32
    %c0_i32_1 = arith.constant 0 : i32
    return %c0_i32, %c0_i32_0 : i32, i32
  }
  func.func @transform_2(%arg0: i32) -> (i32, i32) {
    %c0_i32 = arith.constant 0 : i32
    %c0_i32_0 = arith.constant 0 : i32
    return %arg0, %c0_i32 : i32, i32
  }
}

</mosaic_0001>

<llo_original>
// kernel: tpu_custom_call.1
$region0: #{tpu_custom_call.1}
  #allocation0 [shape = 'u32[]', space=smem, size = 0x4, offset = 0x4, fixed_abs, tag = 'smem constant byte address 0x4 - core index']
  #allocation1 [shape = 'u32[144,128]{1,0:T(1,128)}', space=vmem, size = 0x12000, scoped, tag = 'internal scratch']
  %s0 = inlined_call_operand.vmem [shape: f32[8,4], index: 0, kind: input, shape index: {}]
  %s1 = inlined_call_operand.vmem [shape: f32[5,128], index: 1, kind: input, shape index: {}]
  %s2 = inlined_call_operand.hbm [shape: f32[8,128], index: 2, kind: output, shape index: {}]
  %s3 = sld [smem:[#allocation0]]
  $region18: #{tpu_custom_call.1} parent=0
    _
  %s5 = ssub.s32 1, %s3
  %s6 = scalar_select 0, %s5, %s3
  $region1: #{tpu_custom_call.1} parent=0
    #allocation2 [shape = 'u8[4096]{0}', space=vmem, size = 0x1000, scoped, tag = 'output window, operand 0, single buffered']
    #allocation3 [shape = 's32[1]{0}', space=sflag, size = 0x4, scoped, tag = 'scoped memory for tpu_custom_call.1']
    %7 = vsyncpa [#allocation3], 0
    // Predicated region
    $region2: #{tpu_custom_call.1} parent=1 // pred_check
      _
    $region3: #{tpu_custom_call.1} parent=1 // pred_check_branch
      %9 = sbr.rel (0) target = $region5
    $region4: #{tpu_custom_call.1} parent=1 // pred_region
      _
    $region5: #{tpu_custom_call.1} parent=1 // pred_fallthru
      _
    // Predicated region
    $region6: #{tpu_custom_call.1} parent=1 // pred_check
      _
    $region7: #{tpu_custom_call.1} parent=1 // pred_check_branch
      %11 = sbr.rel (0) target = $region9
    $region8: #{tpu_custom_call.1} parent=1 // pred_region
      _
    $region9: #{tpu_custom_call.1} parent=1 // pred_fallthru
      _
    %v12 = vld [vmem:[%s0] sm:$0xff]
    %v13 = vld [vmem:[%s1] sm:$0x1]
    %15 = vset.pattern.permute.xlu0 0
    %16 = vperm.xlu0 %15, %v12
    %v17 = vpop.permute.xlu0 %16
    %v19 = vlaneseq
    %v20 = vshrl.u32 %v19, 7
    %v21 = vsub.s32 0, %v20
    %v22 = vrot.slane %v13, %v21
    %v23 = vmul.f32 %v17, %v22
    %v24 = vld [vmem:[%s1 + $0x4] sm:$0x1]
    %v25 = vlaneseq
    %v26 = vshrl.u32 %v25, 7
    %v27 = vsub.s32 0, %v26
    %v28 = vrot.slane %v24, %v27
    %v29 = vadd.f32 %v23, %v28
    %v30 = vld [vmem:[%s1 + $0x1] sm:$0x1]
    %31 = vset.pattern.permute.xlu0 1
    %32 = vperm.xlu0 %31, %v12
    %v33 = vpop.permute.xlu0 %32
    %v35 = vlaneseq
    %v36 = vshrl.u32 %v35, 7
    %v37 = vsub.s32 0, %v36
    %v38 = vrot.slane %v30, %v37
    %v39 = vmul.f32 %v33, %v38
    %v40 = vadd.f32 %v29, %v39
    %v41 = vld [vmem:[%s1 + $0x2] sm:$0x1]
    %42 = vset.pattern.permute.xlu0 2
    %43 = vperm.xlu0 %42, %v12
    %v44 = vpop.permute.xlu0 %43
    %v46 = vlaneseq
    %v47 = vshrl.u32 %v46, 7
    %v48 = vsub.s32 0, %v47
    %v49 = vrot.slane %v41, %v48
    %v50 = vmul.f32 %v44, %v49
    %v51 = vadd.f32 %v40, %v50
    %v52 = vld [vmem:[%s1 + $0x3] sm:$0x1]
    %53 = vset.pattern.permute.xlu0 3
    %54 = vperm.xlu0 %53, %v12
    %v55 = vpop.permute.xlu0 %54
    %v57 = vlaneseq
    %v58 = vshrl.u32 %v57, 7
    %v59 = vsub.s32 0, %v58
    %v60 = vrot.slane %v52, %v59
    %v61 = vmul.f32 %v55, %v60
    %v62 = vadd.f32 %v51, %v61
    %v63 = vand.u32 2147483647, %v62
    %vm64 = vcmp.le.f32.partialorder %v63, 0.7853982
    %vm65 = vcmp.lt.s32.totalorder %v62, 0
    %v66 = vand.u32 %v62, 2139095040
    %v67 = vshrl.u32 %v66, 23
    %v68 = vsub.s32 %v67, 127
    %v69 = vand.u32 2147483647, %v62
    %v70 = vand.u32 %v69, 8388607
    %v71 = vor.u32 %v70, 8388608
    %v72 = vsub.s32 0, %v71
    %v73 = vadd.s32 %v68, 1
    %vm74 = vcmp.gt.s32.totalorder %v73, 0
    %v75 = vsel %vm74, %v73, 0
    %v76 = vshrl.u32 %v75, 5
    %v77 = vand.u32 %v75, 31
    %v78 = vsub.s32 32, %v77
    %v79 = vshrl.u32 683565275, %v78
    %v80 = vshll.u32 683565275, %v77
    %v81 = vshrl.u32 2475754826, %v78
    %v82 = vor.u32 %v80, %v81
    %v83 = vshll.u32 2475754826, %v77
    %v84 = vshrl.u32 2131351028, %v78
    %v85 = vor.u32 %v83, %v84
    %v86 = vshll.u32 2131351028, %v77
    %v87 = vshrl.u32 2102212464, %v78
    %v88 = vor.u32 %v86, %v87
    %v89 = vshll.u32 2102212464, %v77
    %v90 = vshrl.u32 920167782, %v78
    %v91 = vor.u32 %v89, %v90
    %v92 = vshll.u32 920167782, %v77
    %v93 = vshrl.u32 1326507024, %v78
    %v94 = vor.u32 %v92, %v93
    %vm95 = vcmp.lt.s32.totalorder %v76, 1
    %vm96 = vcmp.lt.s32.totalorder %v76, 2
    %vm97 = vcmp.lt.s32.totalorder %v76, 3
    %vm98 = vcmp.lt.s32.totalorder %v76, 4
    %v99 = vsel %vm95, %v79, %v82
    %v100 = vsel %vm98, %v88, 2102212464
    %v101 = vsel %vm97, %v85, %v100
    %v102 = vsel %vm96, %v99, %v101
    %v103 = vsel %vm95, %v82, %v85
    %v104 = vsel %vm98, %v91, 920167782
    %v105 = vsel %vm97, %v88, %v104
    %v106 = vsel %vm96, %v103, %v105
    %v107 = vsel %vm95, %v85, %v88
    %v108 = vsel %vm98, %v94, 1326507024
    %v109 = vsel %vm97, %v91, %v108
    %v110 = vsel %vm96, %v107, %v109
    %v111 = vshll.u32 %v71, 8
    %v112 = vmul.u32.u64.compose %v111, %v110
    %v113 = vextract.low.u32 %v112
    %v114 = vextract.high.u32 %v112
    %v115 = vmul.u32.u64.compose %v111, %v106
    %v116 = vextract.low.u32 %v115
    %v117 = vextract.high.u32 %v115
    %v118 = vmul.u32 %v111, %v102
    %v119 = vadd.s32 %v114, %v116
    %vm120 = vc.u32 %v114, %v116
    %v121 = vadd.s32 %v117, 1
    %v122 = vsel %vm120, %v121, %v117
    %v123 = vadd.s32 %v118, %v122
    %v124 = vadd.s32 %v123, 536870912
    %v125 = vshrl.u32 %v124, 30
    %v126 = vshll.u32 %v125, 30
    %v127 = vsub.s32 %v123, %v126
    %vm128 = vcmp.lt.s32.totalorder %v127, 0
    %v129 = vsub.s32 0, %v127
    %v130 = vsel %vm128, %v129, %v127
    %v131 = vclz %v130
    %v132 = vsub.s32 %v131, 2
    %vm133 = vcmp.gt.s32.totalorder 0, %v132
    %v134 = vsel %vm133, 0, %v132
    %v135 = vsub.s32 32, %v134
    %v136 = vshll.u32 %v127, %v134
    %v137 = vshrl.u32 %v119, %v135
    %v138 = vor.u32 %v136, %v137
    %v139 = vsub.s32 4294967266, %v134
    %v140 = vadd.s32 %v139, 127
    %v141 = vshll.u32 %v140, 23
    %v142 = vor.u32 4788187, %v141
    %v143 = vand.u32 2147483647, %v142
    %v145 = vcvt.s32.f32 %v138
    %v146 = vmul.f32 %v145, %v143
    %v147 = vxor.u32 %v146, 2147483648
    %v148 = vsel %vm65, %v147, %v146
    %v149 = vsub.s32 4, %v125
    %v150 = vsel %vm65, %v149, %v125
    %v151 = vsel %vm64, %v62, %v148
    %v152 = vsel %vm64, 0, %v150
    %v153 = vcosq.f32.pop %v151
    %v154 = vsinq.f32.pop %v151
    %vm155 = vweird.f32 %v62
    %v156 = vadd.s32 %v152, 3
    %v157 = vand.u32 %v156, 3
    %vm158 = vcmp.lt.s32.totalorder %v157, 2
    %vm159 = vcmp.eq.s32.totalorder %v157, 0
    %v160 = vxor.u32 %v154, 2147483648
    %v161 = vsel %vm159, %v153, %v160
    %vm162 = vcmp.eq.s32.totalorder %v157, 2
    %v163 = vxor.u32 %v153, 2147483648
    %v164 = vsel %vm162, %v163, %v154
    %v165 = vsel %vm158, %v161, %v164
    %v166 = vsel %vm155, nan, %v165
    %167 = vst [vmem:[#allocation2] sm:$0xff] %v166
    // Predicated region
    $region10: #{tpu_custom_call.1} parent=1 // pred_check
      _
    $region11: #{tpu_custom_call.1} parent=1 // pred_check_branch
      %169 = sbr.rel (0) target = $region13
    $region12: #{tpu_custom_call.1} parent=1 // pred_region
      %s171 = ssub.s32 128, 128
      %172 = vsyncadd [#allocation3], %s171
      %s174 = sshll.u32 [#allocation2], 4
      %s175 = int_to_ptr.vmem [resolvable:$true] %s174
      %177 = dma.vmem_to_hbm [thread:$0]  %s175, 128, %s2, [#allocation3]
    $region13: #{tpu_custom_call.1} parent=1 // pred_fallthru
      _
    // Predicated region
    $region14: #{tpu_custom_call.1} parent=1 // pred_check
      _
    $region15: #{tpu_custom_call.1} parent=1 // pred_check_branch
      %179 = sbr.rel (0) target = $region17
    $region16: #{tpu_custom_call.1} parent=1 // pred_region
      %180 = dma.done [#allocation3], 128
    $region17: #{tpu_custom_call.1} parent=1 // pred_fallthru
      _
    %181 = vsyncpa [#allocation3], 1

</llo_original>
